<compile_context>
chip_gen: v7x
topology: tpu7x:2x2x1
jax: 0.10.0
libtpu: 0.0.40
codegen_flags: <defaults>
</compile_context>

<pallas_src>
import functools
import math

import jax
import jax.numpy as jnp
from jax.experimental import pallas as pl
from jax.experimental.pallas import tpu as pltpu


def _dsconv_kernel(x_ref, g_ref, a_ref, b_ref, o_ref, im_ref, *, K, CW, CWS):
    # x_ref : (BM, CW)       activation rows (BM = whole batches * L), lane = c*W + w_in
    # g_ref : (K, BM, 1)     per-(tap,row) 0/1 gates implementing vertical zero padding
    # a_ref : (K*CWS, OWP)   im2col-folded depthwise x pointwise weights (zero padded)
    # b_ref : (1, OWP)       folded bias lanes
    # o_ref : (BM, OWP)      lane-dense output rows
    # im_ref: (BM, K*CWS)    VMEM scratch: im2col LHS built in-kernel (never hits HBM)
    p = K // 2
    BM = x_ref.shape[0]
    x = x_ref[...]                                   # (BM, CW) f32

    if CWS != CW:
        # zero the pad lanes (and any stale scratch) — chunk stores below never touch them
        im_ref[...] = jnp.zeros_like(im_ref)

    for i in range(K):                               # K row taps, statically unrolled
        di = i - p
        if di == 0:
            xi = x
        else:
            # vertical shift on the narrow input via an XLU sublane roll:
            #   xi[r] = x[r + di]  (wrapped), then batch-aware zero-pad gate kills rows
            #   whose source lies outside their own batch (or outside [0, L)).
            xi = pltpu.roll(x, shift=(-di) % BM, axis=0) * g_ref[i]
        im_ref[:, i * CWS:i * CWS + CW] = xi         # lane-aligned chunk store

    # one lane-dense MXU matmul over the whole folded (K*C*W) contraction + one bias add
    o_ref[...] = (
        jnp.dot(im_ref[...], a_ref[...], preferred_element_type=jnp.float32)
        + b_ref[...]
    )


def depthwise_separable_conv(x, w_dw, b_dw, w_pw, b_pw):
    """x: (B, L, C, W) f32, weights in PyTorch Conv2d layout.
    Returns (B, L, out_ch, W) — identical to DepthwiseSeparableConv(dim=2).forward."""
    B, L, C, W = x.shape
    K = w_dw.shape[-1]
    O = w_pw.shape[0]
    assert K % 2 == 1, "module semantics (padding=K//2, same-size output) require odd K"
    p = K // 2
    CW, OW = C * W, O * W
    CWS = -(-CW // 128) * 128          # per-tap im2col chunk stride (lane-aligned)
    OWP = -(-OW // 128) * 128          # lane-dense (unmasked-store) output width
    KCWS = K * CWS

    # ---- weights-only preprocessing (tiny; never touches x in HBM) -------------------
    wd = w_dw[:, 0]                    # (C, K, K)  depthwise taps (cross-correlation)
    wp = w_pw[:, :, 0, 0]              # (O, C)     pointwise 1x1 weights

    # Banded fold:  A[i, c*W + w_in, o*W + w_out] =
    #   wp[o, c] * wd[c, i, w_in - w_out + p]   if 0 <= w_in - w_out + p < K   else 0
    jrel = jnp.arange(W)[:, None] - jnp.arange(W)[None, :] + p        # (W_in, W_out)
    valid = (jrel >= 0) & (jrel < K)
    band = wd[:, :, jnp.clip(jrel, 0, K - 1)] * valid                 # (C, K, W_in, W_out)
    A = jnp.einsum("oc,ckvw->kcvow", wp, band).reshape(K, CW, OW)
    # im2col layout: one (CWS, OWP) zero-padded chunk per row tap, stacked on the rows.
    A2 = (jnp.zeros((K, CWS, OWP), jnp.float32)
             .at[:, :CW, :OW].set(A)
             .reshape(KCWS, OWP))

    # Depthwise bias folded through the (linear) pointwise conv: one bias add total.
    b_eff = b_pw + wp @ b_dw                                          # (O,)
    b_lanes = jnp.zeros((1, OWP), jnp.float32).at[0, :OW].set(jnp.repeat(b_eff, W))

    # ---- tiny geometry-only gates: gate[i, r] = 1 iff row r's tap-i source is in-batch --
    hrow = jnp.tile(jnp.arange(L), B)                                 # (B*L,) row-in-batch
    src = hrow[None, :] + (jnp.arange(K) - p)[:, None]                # (K, B*L)
    gates = ((src >= 0) & (src < L)).astype(jnp.float32)[:, :, None]  # (K, B*L, 1)

    # ---- row tiling: whole batches per grid step (roll+mask halo stays in-block) -------
    bpt = max(1, min(B, max(1, 256 // max(L, 1))))     # ~256 rows per step target
    while B % bpt:
        bpt -= 1
    BM = bpt * L
    if bpt != B and BM % 8 != 0:                       # (8, .) sublane rule for partial blocks
        bpt, BM = B, B * L
    n_tiles = B // bpt

    x_flat = x.reshape(B * L, CW)                      # free: merge of contiguous dims

    vmem_est = 4 * (2 * BM * CW + 2 * K * BM * 128 + 2 * KCWS * OWP
                    + 2 * 8 * OWP + 2 * BM * OWP + BM * KCWS)
    vmem_limit = min(max(4 * vmem_est, 16 * 1024 * 1024), 48 * 1024 * 1024)

    kernel = functools.partial(_dsconv_kernel, K=K, CW=CW, CWS=CWS)
    out = pl.pallas_call(
        kernel,
        out_shape=jax.ShapeDtypeStruct((B * L, OWP), jnp.float32),
        grid_spec=pltpu.PrefetchScalarGridSpec(
            num_scalar_prefetch=0,
            grid=(n_tiles,),
            in_specs=[
                pl.BlockSpec((BM, CW), lambda t: (t, 0)),
                pl.BlockSpec((K, BM, 1), lambda t: (0, t, 0)),
                pl.BlockSpec((KCWS, OWP), lambda t: (0, 0)),   # grid-invariant weights
                pl.BlockSpec((1, OWP), lambda t: (0, 0)),      # grid-invariant bias
            ],
            out_specs=pl.BlockSpec((BM, OWP), lambda t: (t, 0)),
            scratch_shapes=[pltpu.VMEM((BM, KCWS), jnp.float32)],
        ),
        compiler_params=pltpu.CompilerParams(
            dimension_semantics=("parallel",),
            vmem_limit_bytes=vmem_limit,
        ),
    )(x_flat, gates, A2, b_lanes)

    if OWP != OW:
        out = out[:, :OW]
    return out.reshape(B, L, O, W)                     # free: split of lane-dense dim


def reference(x, w_dw, b_dw, w_pw, b_pw):
    """Pure-JAX replica of the PyTorch forward (dim=2 path) for validation."""
    x_nchw = jnp.transpose(x, (0, 2, 1, 3))            # transpose(1, 2): (B, C, L, W)
    K = w_dw.shape[-1]
    p = K // 2
    dn = ("NCHW", "OIHW", "NCHW")
    y = jax.lax.conv_general_dilated(x_nchw, w_dw, (1, 1), [(p, p), (p, p)],
                                     feature_group_count=x_nchw.shape[1],
                                     dimension_numbers=dn)
    y = y + b_dw.reshape(1, -1, 1, 1)
    y = jax.lax.conv_general_dilated(y, w_pw, (1, 1), [(0, 0), (0, 0)],
                                     dimension_numbers=dn)
    y = y + b_pw.reshape(1, -1, 1, 1)
    return jnp.transpose(y, (0, 2, 1, 3))              # (B, L, O, W)


if __name__ == "__main__":
    B, L, C, W = 2, 16, 4, 16      # batch, seq/height, in_ch, width
    O, K = 8, 5                    # out_ch, kernel size (odd, as the module requires)

    key = jax.random.PRNGKey(0)
    kw1, kw2, kb1, kb2, kx = jax.random.split(key, 5)
    # kaiming_normal_-style weights (synthetic, deterministic). Biases get small nonzero
    # values (the module inits them to 0) to exercise the bias-folding path.
    w_dw = jax.random.normal(kw1, (C, 1, K, K), jnp.float32) * math.sqrt(2.0 / (K * K))
    b_dw = 0.1 * jax.random.normal(kb1, (C,), jnp.float32)
    w_pw = jax.random.normal(kw2, (O, C, 1, 1), jnp.float32) * math.sqrt(2.0 / C)
    b_pw = 0.1 * jax.random.normal(kb2, (O,), jnp.float32)
    x = jax.random.normal(kx, (B, L, C, W), jnp.float32)

    out = jax.block_until_ready(depthwise_separable_conv(x, w_dw, b_dw, w_pw, b_pw))
    ref = jax.block_until_ready(reference(x, w_dw, b_dw, w_pw, b_pw))

    assert out.shape == (B, L, O, W), out.shape
    if not jnp.allclose(out, ref, atol=1e-4, rtol=1e-4):
        raise AssertionError("Pallas kernel does not match reference conv")
    print("KERNEL_OK")
</pallas_src>

<mosaic_0001>
module attributes {stable_mosaic.version = 11 : i64} {
  func.func @_dsconv_kernel(%arg0: i32, %arg1: memref<32x64xf32, #tpu.memory_space<vmem>>, %arg2: memref<5x32x1xf32, #tpu.memory_space<vmem>>, %arg3: memref<640x128xf32, #tpu.memory_space<vmem>>, %arg4: memref<1x128xf32, #tpu.memory_space<vmem>>, %arg5: memref<32x128xf32, #tpu.memory_space<vmem>>, %arg6: memref<32x640xf32, #tpu.memory_space<vmem>>) attributes {dimension_semantics = [#tpu.dimension_semantics<parallel>], iteration_bounds = array<i64: 1>, scalar_prefetch = 0 : i64, scratch_operands = 1 : i64, tpu.core_type = #tpu.core_type<tc>, window_params = [{transform_indices = @transform_0, window_bounds = array<i64: 32, 64>}, {transform_indices = @transform_1, window_bounds = array<i64: 5, 32, 1>}, {pipeline_mode = #tpu.pipeline_mode<synchronous>, transform_indices = @transform_2, window_bounds = array<i64: 640, 128>}, {pipeline_mode = #tpu.pipeline_mode<synchronous>, transform_indices = @transform_3, window_bounds = array<i64: 1, 128>}, {transform_indices = @transform_4, window_bounds = array<i64: 32, 128>}]} {
    %c0 = arith.constant 0 : index
    %c0_0 = arith.constant 0 : index
    %0 = vector.load %arg1[%c0, %c0_0] : memref<32x64xf32, #tpu.memory_space<vmem>>, vector<32x64xf32>
    %cst = arith.constant 0.000000e+00 : f32
    %1 = vector.broadcast %cst : f32 to vector<32x640xf32>
    %c0_1 = arith.constant 0 : index
    %c0_2 = arith.constant 0 : index
    %2 = vector.load %arg6[%c0_1, %c0_2] : memref<32x640xf32, #tpu.memory_space<vmem>>, vector<32x640xf32>
    tpu.vector_store %arg6[%c0_1, %c0_2], %1 {strides = array<i32>} : memref<32x640xf32, #tpu.memory_space<vmem>>, vector<32x640xf32>,
    %c2_i32 = arith.constant 2 : i32
    %3 = tpu.dynamic_rotate %0 by %c2_i32 dim 0 : vector<32x64xf32>, i32 -> vector<32x64xf32>
    %c0_3 = arith.constant 0 : index
    %c0_4 = arith.constant 0 : index
    %c0_5 = arith.constant 0 : index
    %4 = vector.load %arg2[%c0_3, %c0_4, %c0_5] : memref<5x32x1xf32, #tpu.memory_space<vmem>>, vector<1x32x1xf32>
    %5 = vector.shape_cast %4 : vector<1x32x1xf32> to vector<32x1xf32>
    %6 = vector.broadcast %5 : vector<32x1xf32> to vector<32x64xf32>
    %7 = arith.mulf %3, %6 : vector<32x64xf32>
    %c0_6 = arith.constant 0 : index
    %c0_7 = arith.constant 0 : index
    %8 = vector.load %arg6[%c0_6, %c0_7] : memref<32x640xf32, #tpu.memory_space<vmem>>, vector<32x64xf32>
    tpu.vector_store %arg6[%c0_6, %c0_7], %7 {strides = array<i32>} : memref<32x640xf32, #tpu.memory_space<vmem>>, vector<32x64xf32>,
    %c1_i32 = arith.constant 1 : i32
    %9 = tpu.dynamic_rotate %0 by %c1_i32 dim 0 : vector<32x64xf32>, i32 -> vector<32x64xf32>
    %c1 = arith.constant 1 : index
    %c0_8 = arith.constant 0 : index
    %c0_9 = arith.constant 0 : index
    %10 = vector.load %arg2[%c1, %c0_8, %c0_9] : memref<5x32x1xf32, #tpu.memory_space<vmem>>, vector<1x32x1xf32>
    %11 = vector.shape_cast %10 : vector<1x32x1xf32> to vector<32x1xf32>
    %12 = vector.broadcast %11 : vector<32x1xf32> to vector<32x64xf32>
    %13 = arith.mulf %9, %12 : vector<32x64xf32>
    %c0_10 = arith.constant 0 : index
    %c128 = arith.constant 128 : index
    %14 = vector.load %arg6[%c0_10, %c128] : memref<32x640xf32, #tpu.memory_space<vmem>>, vector<32x64xf32>
    tpu.vector_store %arg6[%c0_10, %c128], %13 {strides = array<i32>} : memref<32x640xf32, #tpu.memory_space<vmem>>, vector<32x64xf32>,
    %c0_11 = arith.constant 0 : index
    %c256 = arith.constant 256 : index
    %15 = vector.load %arg6[%c0_11, %c256] : memref<32x640xf32, #tpu.memory_space<vmem>>, vector<32x64xf32>
    tpu.vector_store %arg6[%c0_11, %c256], %0 {strides = array<i32>} : memref<32x640xf32, #tpu.memory_space<vmem>>, vector<32x64xf32>,
    %c31_i32 = arith.constant 31 : i32
    %16 = tpu.dynamic_rotate %0 by %c31_i32 dim 0 : vector<32x64xf32>, i32 -> vector<32x64xf32>
    %c3 = arith.constant 3 : index
    %c0_12 = arith.constant 0 : index
    %c0_13 = arith.constant 0 : index
    %17 = vector.load %arg2[%c3, %c0_12, %c0_13] : memref<5x32x1xf32, #tpu.memory_space<vmem>>, vector<1x32x1xf32>
    %18 = vector.shape_cast %17 : vector<1x32x1xf32> to vector<32x1xf32>
    %19 = vector.broadcast %18 : vector<32x1xf32> to vector<32x64xf32>
    %20 = arith.mulf %16, %19 : vector<32x64xf32>
    %c0_14 = arith.constant 0 : index
    %c384 = arith.constant 384 : index
    %21 = vector.load %arg6[%c0_14, %c384] : memref<32x640xf32, #tpu.memory_space<vmem>>, vector<32x64xf32>
    tpu.vector_store %arg6[%c0_14, %c384], %20 {strides = array<i32>} : memref<32x640xf32, #tpu.memory_space<vmem>>, vector<32x64xf32>,
    %c30_i32 = arith.constant 30 : i32
    %22 = tpu.dynamic_rotate %0 by %c30_i32 dim 0 : vector<32x64xf32>, i32 -> vector<32x64xf32>
    %c4 = arith.constant 4 : index
    %c0_15 = arith.constant 0 : index
    %c0_16 = arith.constant 0 : index
    %23 = vector.load %arg2[%c4, %c0_15, %c0_16] : memref<5x32x1xf32, #tpu.memory_space<vmem>>, vector<1x32x1xf32>
    %24 = vector.shape_cast %23 : vector<1x32x1xf32> to vector<32x1xf32>
    %25 = vector.broadcast %24 : vector<32x1xf32> to vector<32x64xf32>
    %26 = arith.mulf %22, %25 : vector<32x64xf32>
    %c0_17 = arith.constant 0 : index
    %c512 = arith.constant 512 : index
    %27 = vector.load %arg6[%c0_17, %c512] : memref<32x640xf32, #tpu.memory_space<vmem>>, vector<32x64xf32>
    tpu.vector_store %arg6[%c0_17, %c512], %26 {strides = array<i32>} : memref<32x640xf32, #tpu.memory_space<vmem>>, vector<32x64xf32>,
    %c0_18 = arith.constant 0 : index
    %c0_19 = arith.constant 0 : index
    %28 = vector.load %arg6[%c0_18, %c0_19] : memref<32x640xf32, #tpu.memory_space<vmem>>, vector<32x640xf32>
    %c0_20 = arith.constant 0 : index
    %c0_21 = arith.constant 0 : index
    %29 = vector.load %arg3[%c0_20, %c0_21] : memref<640x128xf32, #tpu.memory_space<vmem>>, vector<640x128xf32>
    %cst_22 = arith.constant dense<0.000000e+00> : vector<32x128xf32>
    %30 = tpu.matmul %28, %29, %cst_22 {dimension_numbers = #tpu.dot_dimension_numbers<[1], [0], [0], [1], [0, 0, 1, 1], [], []>} : vector<32x640xf32>, vector<640x128xf32>, vector<32x128xf32> -> vector<32x128xf32>
    %c0_23 = arith.constant 0 : index
    %c0_24 = arith.constant 0 : index
    %31 = vector.load %arg4[%c0_23, %c0_24] : memref<1x128xf32, #tpu.memory_space<vmem>>, vector<1x128xf32>
    %32 = vector.broadcast %31 : vector<1x128xf32> to vector<32x128xf32>
    %33 = arith.addf %30, %32 : vector<32x128xf32>
    %c0_25 = arith.constant 0 : index
    %c0_26 = arith.constant 0 : index
    %34 = vector.load %arg5[%c0_25, %c0_26] : memref<32x128xf32, #tpu.memory_space<vmem>>, vector<32x128xf32>
    tpu.vector_store %arg5[%c0_25, %c0_26], %33 {strides = array<i32>} : memref<32x128xf32, #tpu.memory_space<vmem>>, vector<32x128xf32>,
    return
  }
  func.func @transform_0(%arg0: i32) -> (i32, i32) {
    %c0_i32 = arith.constant 0 : i32
    %c0_i32_0 = arith.constant 0 : i32
    return %arg0, %c0_i32 : i32, i32
  }
  func.func @transform_1(%arg0: i32) -> (i32, i32, i32) {
    %c0_i32 = arith.constant 0 : i32
    %c0_i32_0 = arith.constant 0 : i32
    %c0_i32_1 = arith.constant 0 : i32
    return %c0_i32, %arg0, %c0_i32_0 : i32, i32, i32
  }
  func.func @transform_2(%arg0: i32) -> (i32, i32) {
    %c0_i32 = arith.constant 0 : i32
    %c0_i32_0 = arith.constant 0 : i32
    %c0_i32_1 = arith.constant 0 : i32
    return %c0_i32, %c0_i32_0 : i32, i32
  }
  func.func @transform_3(%arg0: i32) -> (i32, i32) {
    %c0_i32 = arith.constant 0 : i32
    %c0_i32_0 = arith.constant 0 : i32
    %c0_i32_1 = arith.constant 0 : i32
    return %c0_i32, %c0_i32_0 : i32, i32
  }
  func.func @transform_4(%arg0: i32) -> (i32, i32) {
    %c0_i32 = arith.constant 0 : i32
    %c0_i32_0 = arith.constant 0 : i32
    return %arg0, %c0_i32 : i32, i32
  }
}

</mosaic_0001>

<llo_original>
// kernel: tpu_custom_call.1
$region0: #{tpu_custom_call.1}
  #allocation0 [shape = 'u32[]', space=smem, size = 0x4, offset = 0x4, fixed_abs, tag = 'smem constant byte address 0x4 - core index']
  #allocation1 [shape = 'u32[144,128]{1,0:T(1,128)}', space=vmem, size = 0x12000, scoped, tag = 'internal scratch']
  #allocation2 [shape = 'f32[32,640]{1,0:T(8,128)}', space=vmem, size = 0x14000, scoped, tag = 'scratch operand']
  %s0 = inlined_call_operand.vmem [shape: f32[32,64], index: 0, kind: input, shape index: {}]
  %s1 = inlined_call_operand.vmem [shape: f32[5,32,1], index: 1, kind: input, shape index: {}]
  %s2 = inlined_call_operand.hbm [shape: f32[640,128], index: 2, kind: input, shape index: {}]
  %s3 = inlined_call_operand.vmem [shape: f32[1,128], index: 3, kind: input, shape index: {}]
  %s4 = inlined_call_operand.hbm [shape: f32[32,128], index: 4, kind: output, shape index: {}]
  %s5 = sld [smem:[#allocation0]]
  $region30: #{tpu_custom_call.1} parent=0
    _
  %s7 = ssub.s32 1, %s5
  %s8 = scalar_select 0, %s7, %s5
  $region1: #{tpu_custom_call.1} parent=0
    #allocation3 [shape = 'u8[327680]{0}', space=vmem, size = 0x50000, scoped, tag = 'input window, operand 2, single buffered']
    #allocation4 [shape = 's32[1]{0}', space=sflag, size = 0x4, scoped, tag = 'scoped memory for tpu_custom_call.1']
    #allocation5 [shape = 's32[1]{0}', space=sflag, size = 0x4, scoped, tag = 'scoped memory for tpu_custom_call.1']
    #allocation6 [shape = 'u8[16384]{0}', space=vmem, size = 0x4000, scoped, tag = 'output window, operand 0, single buffered']
    %9 = vsyncpa [#allocation4], 0
    %10 = vsyncpa [#allocation5], 0
    // Predicated region
    $region2: #{tpu_custom_call.1} parent=1 // pred_check
      _
    $region3: #{tpu_custom_call.1} parent=1 // pred_check_branch
      %12 = sbr.rel (0) target = $region5
    $region4: #{tpu_custom_call.1} parent=1 // pred_region
      _
    $region5: #{tpu_custom_call.1} parent=1 // pred_fallthru
      _
    // Predicated region
    $region6: #{tpu_custom_call.1} parent=1 // pred_check
      _
    $region7: #{tpu_custom_call.1} parent=1 // pred_check_branch
      %14 = sbr.rel (0) target = $region9
    $region8: #{tpu_custom_call.1} parent=1 // pred_region
      _
    $region9: #{tpu_custom_call.1} parent=1 // pred_fallthru
      _
    // Predicated region
    $region10: #{tpu_custom_call.1} parent=1 // pred_check
      _
    $region11: #{tpu_custom_call.1} parent=1 // pred_check_branch
      %16 = sbr.rel (0) target = $region13
    $region12: #{tpu_custom_call.1} parent=1 // pred_region
      %s18 = ssub.s32 10240, 10240
      %19 = vsyncadd [#allocation4], %s18
      %s20 = sshll.u32 [#allocation3], 4
      %s21 = int_to_ptr.vmem [resolvable:$true] %s20
      %26 = dma.hbm_to_vmem [thread:$0]  %s2, 10240, %s21, [#allocation4], 128, 128, 8
    $region13: #{tpu_custom_call.1} parent=1 // pred_fallthru
      _
    // Predicated region
    $region14: #{tpu_custom_call.1} parent=1 // pred_check
      _
    $region15: #{tpu_custom_call.1} parent=1 // pred_check_branch
      %28 = sbr.rel (0) target = $region17
    $region16: #{tpu_custom_call.1} parent=1 // pred_region
      _
    $region17: #{tpu_custom_call.1} parent=1 // pred_fallthru
      _
    // Predicated region
    $region18: #{tpu_custom_call.1} parent=1 // pred_check
      _
    $region19: #{tpu_custom_call.1} parent=1 // pred_check_branch
      %30 = sbr.rel (0) target = $region21
    $region20: #{tpu_custom_call.1} parent=1 // pred_region
      %31 = dma.done [#allocation4], 10240
    $region21: #{tpu_custom_call.1} parent=1 // pred_fallthru
      _
    %v32 = vld [vmem:[%s0] sm:$0xff]
    %v33 = vld [vmem:[%s0 + $0x8] sm:$0xff]
    %v34 = vld [vmem:[%s0 + $0x10] sm:$0xff]
    %v35 = vld [vmem:[%s0 + $0x18] sm:$0xff]
    %36 = vst [vmem:[#allocation2] sm:$0xff] 0.0
    %37 = vst [vmem:[#allocation2 + $0x8] sm:$0xff] 0.0
    %38 = vst [vmem:[#allocation2 + $0x10] sm:$0xff] 0.0
    %39 = vst [vmem:[#allocation2 + $0x18] sm:$0xff] 0.0
    %40 = vst [vmem:[#allocation2 + $0x20] sm:$0xff] 0.0
    %41 = vst [vmem:[#allocation2 + $0x28] sm:$0xff] 0.0
    %42 = vst [vmem:[#allocation2 + $0x30] sm:$0xff] 0.0
    %43 = vst [vmem:[#allocation2 + $0x38] sm:$0xff] 0.0
    %44 = vst [vmem:[#allocation2 + $0x40] sm:$0xff] 0.0
    %45 = vst [vmem:[#allocation2 + $0x48] sm:$0xff] 0.0
    %46 = vst [vmem:[#allocation2 + $0x50] sm:$0xff] 0.0
    %47 = vst [vmem:[#allocation2 + $0x58] sm:$0xff] 0.0
    %48 = vst [vmem:[#allocation2 + $0x60] sm:$0xff] 0.0
    %49 = vst [vmem:[#allocation2 + $0x68] sm:$0xff] 0.0
    %50 = vst [vmem:[#allocation2 + $0x70] sm:$0xff] 0.0
    %51 = vst [vmem:[#allocation2 + $0x78] sm:$0xff] 0.0
    %52 = vst [vmem:[#allocation2 + $0x80] sm:$0xff] 0.0
    %53 = vst [vmem:[#allocation2 + $0x88] sm:$0xff] 0.0
    %54 = vst [vmem:[#allocation2 + $0x90] sm:$0xff] 0.0
    %55 = vst [vmem:[#allocation2 + $0x98] sm:$0xff] 0.0
    %v56 = vrot.slane %v32, 6
    %v57 = vrot.slane %v33, 6
    %v58 = vrot.slane %v34, 6
    %v59 = vrot.slane %v35, 6
    %v60 = vlaneseq
    %v61 = vshrl.u32 %v60, 7
    %vm62 = vcmp.lt.s32.totalorder %v61, 2
    %v63 = vsel %vm62, %v58, %v59
    %v64 = vsel %vm62, %v57, %v58
    %v65 = vsel %vm62, %v56, %v57
    %v66 = vsel %vm62, %v59, %v56
    %v67 = vld [vmem:[%s1] sm:$0xff]
    %v68 = vld [vmem:[%s1 + $0x8] sm:$0xff]
    %v69 = vld [vmem:[%s1 + $0x10] sm:$0xff]
    %v70 = vld [vmem:[%s1 + $0x18] sm:$0xff]
    %72 = vset.pattern.permute.xlu0 0
    %73 = vperm.xlu0 %72, %v67
    %v74 = vpop.permute.xlu0 %73
    %77 = vset.pattern.permute.xlu0 0
    %78 = vperm.xlu0 %77, %v68
    %v79 = vpop.permute.xlu0 %78
    %82 = vset.pattern.permute.xlu0 0
    %83 = vperm.xlu0 %82, %v69
    %v84 = vpop.permute.xlu0 %83
    %87 = vset.pattern.permute.xlu0 0
    %88 = vperm.xlu0 %87, %v70
    %v89 = vpop.permute.xlu0 %88
    %v91 = vmul.f32 %v66, %v74
    %v92 = vmul.f32 %v65, %v79
    %v93 = vmul.f32 %v64, %v84
    %v94 = vmul.f32 %v63, %v89
    %vm95 = vcmask 523264
    %96 = vst.msk [vmem:[#allocation2] sm:$0xff] %vm95, %v91
    %97 = vst.msk [vmem:[#allocation2 + $0x28] sm:$0xff] %vm95, %v92
    %98 = vst.msk [vmem:[#allocation2 + $0x50] sm:$0xff] %vm95, %v93
    %99 = vst.msk [vmem:[#allocation2 + $0x78] sm:$0xff] %vm95, %v94
    %v100 = vrot.slane %v32, 7
    %v101 = vrot.slane %v33, 7
    %v102 = vrot.slane %v34, 7
    %v103 = vrot.slane %v35, 7
    %vm104 = vcmp.lt.s32.totalorder %v61, 1
    %v105 = vsel %vm104, %v102, %v103
    %v106 = vsel %vm104, %v101, %v102
    %v107 = vsel %vm104, %v100, %v101
    %v108 = vsel %vm104, %v103, %v100
    %s109 = scalar_lea.vmem %s1, 32
    %v110 = vld [vmem:[%s109] sm:$0xff]
    %v111 = vld [vmem:[%s109 + $0x8] sm:$0xff]
    %v112 = vld [vmem:[%s109 + $0x10] sm:$0xff]
    %v113 = vld [vmem:[%s109 + $0x18] sm:$0xff]
    %115 = vset.pattern.permute.xlu0 0
    %116 = vperm.xlu0 %115, %v110
    %v117 = vpop.permute.xlu0 %116
    %120 = vset.pattern.permute.xlu0 0
    %121 = vperm.xlu0 %120, %v111
    %v122 = vpop.permute.xlu0 %121
    %125 = vset.pattern.permute.xlu0 0
    %126 = vperm.xlu0 %125, %v112
    %v127 = vpop.permute.xlu0 %126
    %130 = vset.pattern.permute.xlu0 0
    %131 = vperm.xlu0 %130, %v113
    %v132 = vpop.permute.xlu0 %131
    %v134 = vmul.f32 %v108, %v117
    %v135 = vmul.f32 %v107, %v122
    %v136 = vmul.f32 %v106, %v127
    %v137 = vmul.f32 %v105, %v132
    %138 = vst.msk [vmem:[#allocation2 + $0x8] sm:$0xff] %vm95, %v134
    %139 = vst.msk [vmem:[#allocation2 + $0x30] sm:$0xff] %vm95, %v135
    %140 = vst.msk [vmem:[#allocation2 + $0x58] sm:$0xff] %vm95, %v136
    %141 = vst.msk [vmem:[#allocation2 + $0x80] sm:$0xff] %vm95, %v137
    %142 = vst.msk [vmem:[#allocation2 + $0x10] sm:$0xff] %vm95, %v32
    %143 = vst.msk [vmem:[#allocation2 + $0x38] sm:$0xff] %vm95, %v33
    %144 = vst.msk [vmem:[#allocation2 + $0x60] sm:$0xff] %vm95, %v34
    %145 = vst.msk [vmem:[#allocation2 + $0x88] sm:$0xff] %vm95, %v35
    %v146 = vrot.slane %v32, 1
    %v147 = vrot.slane %v33, 1
    %v148 = vrot.slane %v34, 1
    %v149 = vrot.slane %v35, 1
    %vm150 = vcmp.lt.s32.totalorder %v61, 7
    %v151 = vsel %vm150, %v148, %v149
    %v152 = vsel %vm150, %v147, %v148
    %v153 = vsel %vm150, %v146, %v147
    %v154 = vsel %vm150, %v149, %v146
    %s155 = scalar_lea.vmem %s1, 96
    %v156 = vld [vmem:[%s155] sm:$0xff]
    %v157 = vld [vmem:[%s155 + $0x8] sm:$0xff]
    %v158 = vld [vmem:[%s155 + $0x10] sm:$0xff]
    %v159 = vld [vmem:[%s155 + $0x18] sm:$0xff]
    %161 = vset.pattern.permute.xlu0 0
    %162 = vperm.xlu0 %161, %v156
    %v163 = vpop.permute.xlu0 %162
    %166 = vset.pattern.permute.xlu0 0
    %167 = vperm.xlu0 %166, %v157
    %v168 = vpop.permute.xlu0 %167
    %171 = vset.pattern.permute.xlu0 0
    %172 = vperm.xlu0 %171, %v158
    %v173 = vpop.permute.xlu0 %172
    %176 = vset.pattern.permute.xlu0 0
    %177 = vperm.xlu0 %176, %v159
    %v178 = vpop.permute.xlu0 %177
    %v180 = vmul.f32 %v153, %v163
    %v181 = vmul.f32 %v152, %v168
    %v182 = vmul.f32 %v151, %v173
    %v183 = vmul.f32 %v154, %v178
    %184 = vst.msk [vmem:[#allocation2 + $0x18] sm:$0xff] %vm95, %v180
    %185 = vst.msk [vmem:[#allocation2 + $0x40] sm:$0xff] %vm95, %v181
    %186 = vst.msk [vmem:[#allocation2 + $0x68] sm:$0xff] %vm95, %v182
    %187 = vst.msk [vmem:[#allocation2 + $0x90] sm:$0xff] %vm95, %v183
    %v188 = vrot.slane %v32, 2
    %v189 = vrot.slane %v33, 2
    %v190 = vrot.slane %v34, 2
    %v191 = vrot.slane %v35, 2
    %vm192 = vcmp.lt.s32.totalorder %v61, 6
    %v193 = vsel %vm192, %v190, %v191
    %v194 = vsel %vm192, %v189, %v190
    %v195 = vsel %vm192, %v188, %v189
    %v196 = vsel %vm192, %v191, %v188
    %s197 = scalar_lea.vmem %s1, 128
    %v198 = vld [vmem:[%s197] sm:$0xff]
    %v199 = vld [vmem:[%s197 + $0x8] sm:$0xff]
    %v200 = vld [vmem:[%s197 + $0x10] sm:$0xff]
    %v201 = vld [vmem:[%s197 + $0x18] sm:$0xff]
    %203 = vset.pattern.permute.xlu0 0
    %204 = vperm.xlu0 %203, %v198
    %v205 = vpop.permute.xlu0 %204
    %208 = vset.pattern.permute.xlu0 0
    %209 = vperm.xlu0 %208, %v199
    %v210 = vpop.permute.xlu0 %209
    %213 = vset.pattern.permute.xlu0 0
    %214 = vperm.xlu0 %213, %v200
    %v215 = vpop.permute.xlu0 %214
    %218 = vset.pattern.permute.xlu0 0
    %219 = vperm.xlu0 %218, %v201
    %v220 = vpop.permute.xlu0 %219
    %v222 = vmul.f32 %v195, %v205
    %v223 = vmul.f32 %v194, %v210
    %v224 = vmul.f32 %v193, %v215
    %v225 = vmul.f32 %v196, %v220
    %226 = vst.msk [vmem:[#allocation2 + $0x20] sm:$0xff] %vm95, %v222
    %227 = vst.msk [vmem:[#allocation2 + $0x48] sm:$0xff] %vm95, %v223
    %228 = vst.msk [vmem:[#allocation2 + $0x70] sm:$0xff] %vm95, %v224
    %229 = vst.msk [vmem:[#allocation2 + $0x98] sm:$0xff] %vm95, %v225
    %v230 = vld [vmem:[#allocation2] sm:$0xff]
    %v231 = vld [vmem:[#allocation2 + $0x8] sm:$0xff]
    %v232 = vld [vmem:[#allocation2 + $0x10] sm:$0xff]
    %v233 = vld [vmem:[#allocation2 + $0x18] sm:$0xff]
    %v234 = vld [vmem:[#allocation2 + $0x20] sm:$0xff]
    %v235 = vld [vmem:[#allocation2 + $0x28] sm:$0xff]
    %v236 = vld [vmem:[#allocation2 + $0x30] sm:$0xff]
    %v237 = vld [vmem:[#allocation2 + $0x38] sm:$0xff]
    %v238 = vld [vmem:[#allocation2 + $0x40] sm:$0xff]
    %v239 = vld [vmem:[#allocation2 + $0x48] sm:$0xff]
    %v240 = vld [vmem:[#allocation2 + $0x50] sm:$0xff]
    %v241 = vld [vmem:[#allocation2 + $0x58] sm:$0xff]
    %v242 = vld [vmem:[#allocation2 + $0x60] sm:$0xff]
    %v243 = vld [vmem:[#allocation2 + $0x68] sm:$0xff]
    %v244 = vld [vmem:[#allocation2 + $0x70] sm:$0xff]
    %v245 = vld [vmem:[#allocation2 + $0x78] sm:$0xff]
    %v246 = vld [vmem:[#allocation2 + $0x80] sm:$0xff]
    %v247 = vld [vmem:[#allocation2 + $0x88] sm:$0xff]
    %v248 = vld [vmem:[#allocation2 + $0x90] sm:$0xff]
    %v249 = vld [vmem:[#allocation2 + $0x98] sm:$0xff]
    %v250 = vld [vmem:[#allocation3] sm:$0xff]
    %v251 = vld [vmem:[#allocation3 + $0x8] sm:$0xff]
    %v252 = vld [vmem:[#allocation3 + $0x10] sm:$0xff]
    %v253 = vld [vmem:[#allocation3 + $0x18] sm:$0xff]
    %v254 = vld [vmem:[#allocation3 + $0x20] sm:$0xff]
    %v255 = vld [vmem:[#allocation3 + $0x28] sm:$0xff]
    %v256 = vld [vmem:[#allocation3 + $0x30] sm:$0xff]
    %v257 = vld [vmem:[#allocation3 + $0x38] sm:$0xff]
    %v258 = vld [vmem:[#allocation3 + $0x40] sm:$0xff]
    %v259 = vld [vmem:[#allocation3 + $0x48] sm:$0xff]
    %v260 = vld [vmem:[#allocation3 + $0x50] sm:$0xff]
    %v261 = vld [vmem:[#allocation3 + $0x58] sm:$0xff]
    %v262 = vld [vmem:[#allocation3 + $0x60] sm:$0xff]
    %v263 = vld [vmem:[#allocation3 + $0x68] sm:$0xff]
    %v264 = vld [vmem:[#allocation3 + $0x70] sm:$0xff]
    %v265 = vld [vmem:[#allocation3 + $0x78] sm:$0xff]
    %v266 = vld [vmem:[#allocation3 + $0x80] sm:$0xff]
    %v267 = vld [vmem:[#allocation3 + $0x88] sm:$0xff]
    %v268 = vld [vmem:[#allocation3 + $0x90] sm:$0xff]
    %v269 = vld [vmem:[#allocation3 + $0x98] sm:$0xff]
    %v270 = vld [vmem:[#allocation3 + $0xa0] sm:$0xff]
    %v271 = vld [vmem:[#allocation3 + $0xa8] sm:$0xff]
    %v272 = vld [vmem:[#allocation3 + $0xb0] sm:$0xff]
    %v273 = vld [vmem:[#allocation3 + $0xb8] sm:$0xff]
    %v274 = vld [vmem:[#allocation3 + $0xc0] sm:$0xff]
    %v275 = vld [vmem:[#allocation3 + $0xc8] sm:$0xff]
    %v276 = vld [vmem:[#allocation3 + $0xd0] sm:$0xff]
    %v277 = vld [vmem:[#allocation3 + $0xd8] sm:$0xff]
    %v278 = vld [vmem:[#allocation3 + $0xe0] sm:$0xff]
    %v279 = vld [vmem:[#allocation3 + $0xe8] sm:$0xff]
    %v280 = vld [vmem:[#allocation3 + $0xf0] sm:$0xff]
    %v281 = vld [vmem:[#allocation3 + $0xf8] sm:$0xff]
    %v282 = vld [vmem:[#allocation3 + $0x100] sm:$0xff]
    %v283 = vld [vmem:[#allocation3 + $0x108] sm:$0xff]
    %v284 = vld [vmem:[#allocation3 + $0x110] sm:$0xff]
    %v285 = vld [vmem:[#allocation3 + $0x118] sm:$0xff]
    %v286 = vld [vmem:[#allocation3 + $0x120] sm:$0xff]
    %v287 = vld [vmem:[#allocation3 + $0x128] sm:$0xff]
    %v288 = vld [vmem:[#allocation3 + $0x130] sm:$0xff]
    %v289 = vld [vmem:[#allocation3 + $0x138] sm:$0xff]
    %v290 = vld [vmem:[#allocation3 + $0x140] sm:$0xff]
    %v291 = vld [vmem:[#allocation3 + $0x148] sm:$0xff]
    %v292 = vld [vmem:[#allocation3 + $0x150] sm:$0xff]
    %v293 = vld [vmem:[#allocation3 + $0x158] sm:$0xff]
    %v294 = vld [vmem:[#allocation3 + $0x160] sm:$0xff]
    %v295 = vld [vmem:[#allocation3 + $0x168] sm:$0xff]
    %v296 = vld [vmem:[#allocation3 + $0x170] sm:$0xff]
    %v297 = vld [vmem:[#allocation3 + $0x178] sm:$0xff]
    %v298 = vld [vmem:[#allocation3 + $0x180] sm:$0xff]
    %v299 = vld [vmem:[#allocation3 + $0x188] sm:$0xff]
    %v300 = vld [vmem:[#allocation3 + $0x190] sm:$0xff]
    %v301 = vld [vmem:[#allocation3 + $0x198] sm:$0xff]
    %v302 = vld [vmem:[#allocation3 + $0x1a0] sm:$0xff]
    %v303 = vld [vmem:[#allocation3 + $0x1a8] sm:$0xff]
    %v304 = vld [vmem:[#allocation3 + $0x1b0] sm:$0xff]
    %v305 = vld [vmem:[#allocation3 + $0x1b8] sm:$0xff]
    %v306 = vld [vmem:[#allocation3 + $0x1c0] sm:$0xff]
    %v307 = vld [vmem:[#allocation3 + $0x1c8] sm:$0xff]
    %v308 = vld [vmem:[#allocation3 + $0x1d0] sm:$0xff]
    %v309 = vld [vmem:[#allocation3 + $0x1d8] sm:$0xff]
    %v310 = vld [vmem:[#allocation3 + $0x1e0] sm:$0xff]
    %v311 = vld [vmem:[#allocation3 + $0x1e8] sm:$0xff]
    %v312 = vld [vmem:[#allocation3 + $0x1f0] sm:$0xff]
    %v313 = vld [vmem:[#allocation3 + $0x1f8] sm:$0xff]
    %v314 = vld [vmem:[#allocation3 + $0x200] sm:$0xff]
    %v315 = vld [vmem:[#allocation3 + $0x208] sm:$0xff]
    %v316 = vld [vmem:[#allocation3 + $0x210] sm:$0xff]
    %v317 = vld [vmem:[#allocation3 + $0x218] sm:$0xff]
    %v318 = vld [vmem:[#allocation3 + $0x220] sm:$0xff]
    %v319 = vld [vmem:[#allocation3 + $0x228] sm:$0xff]
    %v320 = vld [vmem:[#allocation3 + $0x230] sm:$0xff]
    %v321 = vld [vmem:[#allocation3 + $0x238] sm:$0xff]
    %v322 = vld [vmem:[#allocation3 + $0x240] sm:$0xff]
    %v323 = vld [vmem:[#allocation3 + $0x248] sm:$0xff]
    %v324 = vld [vmem:[#allocation3 + $0x250] sm:$0xff]
    %v325 = vld [vmem:[#allocation3 + $0x258] sm:$0xff]
    %v326 = vld [vmem:[#allocation3 + $0x260] sm:$0xff]
    %v327 = vld [vmem:[#allocation3 + $0x268] sm:$0xff]
    %v328 = vld [vmem:[#allocation3 + $0x270] sm:$0xff]
    %v329 = vld [vmem:[#allocation3 + $0x278] sm:$0xff]
    %v330 = vld [vmem:[%s3] sm:$0x1]
    %v332 = vlaneseq
    %v333 = vshrl.u32 %v332, 7
    %v334 = vsub.s32 0, %v333
    %v335 = vrot.slane %v330, %v334
    %337 = vmatprep.subr.mxu0 0.0
    %338 = vmatpush1.msra.mxu0 %v250
    %339 = vmatprep.subr.mxu0 0.0
    %340 = vmatpush1.msra.mxu0 %v251
    %341 = vmatprep.subr.mxu0 0.0
    %342 = vmatpush1.msra.mxu0 %v252
    %343 = vmatprep.subr.mxu0 0.0
    %344 = vmatpush1.msra.mxu0 %v253
    %345 = vmatprep.subr.mxu0 0.0
    %346 = vmatpush1.msra.mxu0 %v254
    %347 = vmatprep.subr.mxu0 0.0
    %348 = vmatpush1.msra.mxu0 %v255
    %349 = vmatprep.subr.mxu0 0.0
    %350 = vmatpush1.msra.mxu0 %v256
    %351 = vmatprep.subr.mxu0 0.0
    %352 = vmatpush1.msra.mxu0 %v257
    %353 = vmatprep.subr.mxu0 0.0
    %354 = vmatpush1.msra.mxu0 %v258
    %355 = vmatprep.subr.mxu0 0.0
    %356 = vmatpush1.msra.mxu0 %v259
    %357 = vmatprep.subr.mxu0 0.0
    %358 = vmatpush1.msra.mxu0 %v260
    %359 = vmatprep.subr.mxu0 0.0
    %360 = vmatpush1.msra.mxu0 %v261
    %361 = vmatprep.subr.mxu0 0.0
    %362 = vmatpush1.msra.mxu0 %v262
    %363 = vmatprep.subr.mxu0 0.0
    %364 = vmatpush1.msra.mxu0 %v263
    %365 = vmatprep.subr.mxu0 0.0
    %366 = vmatpush1.msra.mxu0 %v264
    %367 = vmatprep.subr.mxu0 0.0
    %368 = vmatpush1.msra.mxu0 %v265
    %369 = vmatprep.subr.mxu0 0.0
    %370 = vmatpush1.msra.mxu0 %v266
    %371 = vmatprep.subr.mxu0 0.0
    %372 = vmatpush1.msra.mxu0 %v267
    %373 = vmatprep.subr.mxu0 0.0
    %374 = vmatpush1.msra.mxu0 %v268
    %375 = vmatprep.subr.mxu0 0.0
    %376 = vmatpush1.msra.mxu0 %v269
    %377 = vmatprep.subr.mxu0 0.0
    %378 = vmatpush1.msra.mxu0 %v270
    %379 = vmatprep.subr.mxu0 0.0
    %380 = vmatpush1.msra.mxu0 %v271
    %381 = vmatprep.subr.mxu0 0.0
    %382 = vmatpush1.msra.mxu0 %v272
    %383 = vmatprep.subr.mxu0 0.0
    %384 = vmatpush1.msra.mxu0 %v273
    %385 = vmatprep.subr.mxu0 0.0
    %386 = vmatpush1.msra.mxu0 %v274
    %387 = vmatprep.subr.mxu0 0.0
    %388 = vmatpush1.msra.mxu0 %v275
    %389 = vmatprep.subr.mxu0 0.0
    %390 = vmatpush1.msra.mxu0 %v276
    %391 = vmatprep.subr.mxu0 0.0
    %392 = vmatpush1.msra.mxu0 %v277
    %393 = vmatprep.subr.mxu0 0.0
    %394 = vmatpush1.msra.mxu0 %v278
    %395 = vmatprep.subr.mxu0 0.0
    %396 = vmatpush1.msra.mxu0 %v279
    %397 = vmatprep.subr.mxu0 0.0
    %398 = vmatpush1.msra.mxu0 %v280
    %399 = vmatprep.subr.mxu0 0.0
    %400 = vmatpush1.msra.mxu0 %v281
    %401 = vmatprep.mubr.f32.mxu0 %v231
    %402 = vmatmul.mubr.f32.gmra.mrb[0].mxu0 %v230
    %v403 = vpop.f32.mrb[0].mxu0
    %v404 = vadd.f32 %v335, %v403
    %v405 = vpop.f32.mrb[0].mxu0
    %406 = vmatprep.mubr.f32.mxu0 %v236
    %407 = vmatmul.mubr.f32.gmra.mrb[0].mxu0 %v235
    %v408 = vpop.f32.mrb[0].mxu0
    %v409 = vadd.f32 %v335, %v408
    %v410 = vpop.f32.mrb[0].mxu0
    %411 = vmatprep.mubr.f32.mxu0 %v241
    %412 = vmatmul.mubr.f32.gmra.mrb[0].mxu0 %v240
    %v413 = vpop.f32.mrb[0].mxu0
    %v414 = vadd.f32 %v335, %v413
    %v415 = vpop.f32.mrb[0].mxu0
    %416 = vmatprep.mubr.f32.mxu0 %v246
    %417 = vmatmul.mubr.f32.gmra.mrb[0].mxu0 %v245
    %v418 = vpop.f32.mrb[0].mxu0
    %v419 = vadd.f32 %v335, %v418
    %v420 = vpop.f32.mrb[0].mxu0
    %421 = vdwg.mxu0
    %422 = vmatprep.subr.mxu0 0.0
    %423 = vmatpush1.msra.mxu0 %v282
    %424 = vmatprep.subr.mxu0 0.0
    %425 = vmatpush1.msra.mxu0 %v283
    %426 = vmatprep.subr.mxu0 0.0
    %427 = vmatpush1.msra.mxu0 %v284
    %428 = vmatprep.subr.mxu0 0.0
    %429 = vmatpush1.msra.mxu0 %v285
    %430 = vmatprep.subr.mxu0 0.0
    %431 = vmatpush1.msra.mxu0 %v286
    %432 = vmatprep.subr.mxu0 0.0
    %433 = vmatpush1.msra.mxu0 %v287
    %434 = vmatprep.subr.mxu0 0.0
    %435 = vmatpush1.msra.mxu0 %v288
    %436 = vmatprep.subr.mxu0 0.0
    %437 = vmatpush1.msra.mxu0 %v289
    %438 = vmatprep.subr.mxu0 0.0
    %439 = vmatpush1.msra.mxu0 %v290
    %440 = vmatprep.subr.mxu0 0.0
    %441 = vmatpush1.msra.mxu0 %v291
    %442 = vmatprep.subr.mxu0 0.0
    %443 = vmatpush1.msra.mxu0 %v292
    %444 = vmatprep.subr.mxu0 0.0
    %445 = vmatpush1.msra.mxu0 %v293
    %446 = vmatprep.subr.mxu0 0.0
    %447 = vmatpush1.msra.mxu0 %v294
    %448 = vmatprep.subr.mxu0 0.0
    %449 = vmatpush1.msra.mxu0 %v295
    %450 = vmatprep.subr.mxu0 0.0
    %451 = vmatpush1.msra.mxu0 %v296
    %452 = vmatprep.subr.mxu0 0.0
    %453 = vmatpush1.msra.mxu0 %v297
    %454 = vmatprep.subr.mxu0 0.0
    %455 = vmatpush1.msra.mxu0 %v298
    %456 = vmatprep.subr.mxu0 0.0
    %457 = vmatpush1.msra.mxu0 %v299
    %458 = vmatprep.subr.mxu0 0.0
    %459 = vmatpush1.msra.mxu0 %v300
    %460 = vmatprep.subr.mxu0 0.0
    %461 = vmatpush1.msra.mxu0 %v301
    %462 = vmatprep.subr.mxu0 0.0
    %463 = vmatpush1.msra.mxu0 %v302
    %464 = vmatprep.subr.mxu0 0.0
    %465 = vmatpush1.msra.mxu0 %v303
    %466 = vmatprep.subr.mxu0 0.0
    %467 = vmatpush1.msra.mxu0 %v304
    %468 = vmatprep.subr.mxu0 0.0
    %469 = vmatpush1.msra.mxu0 %v305
    %470 = vmatprep.subr.mxu0 0.0
    %471 = vmatpush1.msra.mxu0 %v306
    %472 = vmatprep.subr.mxu0 0.0
    %473 = vmatpush1.msra.mxu0 %v307
    %474 = vmatprep.subr.mxu0 0.0
    %475 = vmatpush1.msra.mxu0 %v308
    %476 = vmatprep.subr.mxu0 0.0
    %477 = vmatpush1.msra.mxu0 %v309
    %478 = vmatprep.subr.mxu0 0.0
    %479 = vmatpush1.msra.mxu0 %v310
    %480 = vmatprep.subr.mxu0 0.0
    %481 = vmatpush1.msra.mxu0 %v311
    %482 = vmatprep.subr.mxu0 0.0
    %483 = vmatpush1.msra.mxu0 %v312
    %484 = vmatprep.subr.mxu0 0.0
    %485 = vmatpush1.msra.mxu0 %v313
    %486 = vmatprep.mubr.f32.mxu0 %v233
    %487 = vmatmul.mubr.f32.gmra.mrb[0].mxu0 %v232
    %v488 = vpop.f32.mrb[0].mxu0
    %v489 = vadd.f32 %v404, %v488
    %v490 = vpop.f32.mrb[0].mxu0
    %491 = vmatprep.mubr.f32.mxu0 %v238
    %492 = vmatmul.mubr.f32.gmra.mrb[0].mxu0 %v237
    %v493 = vpop.f32.mrb[0].mxu0
    %v494 = vadd.f32 %v409, %v493
    %v495 = vpop.f32.mrb[0].mxu0
    %496 = vmatprep.mubr.f32.mxu0 %v243
    %497 = vmatmul.mubr.f32.gmra.mrb[0].mxu0 %v242
    %v498 = vpop.f32.mrb[0].mxu0
    %v499 = vadd.f32 %v414, %v498
    %v500 = vpop.f32.mrb[0].mxu0
    %501 = vmatprep.mubr.f32.mxu0 %v248
    %502 = vmatmul.mubr.f32.gmra.mrb[0].mxu0 %v247
    %v503 = vpop.f32.mrb[0].mxu0
    %v504 = vadd.f32 %v419, %v503
    %v505 = vpop.f32.mrb[0].mxu0
    %506 = vdwg.mxu0
    %507 = vmatprep.subr.mxu0 0.0
    %508 = vmatpush1.msra.mxu0 %v314
    %509 = vmatprep.subr.mxu0 0.0
    %510 = vmatpush1.msra.mxu0 %v315
    %511 = vmatprep.subr.mxu0 0.0
    %512 = vmatpush1.msra.mxu0 %v316
    %513 = vmatprep.subr.mxu0 0.0
    %514 = vmatpush1.msra.mxu0 %v317
    %515 = vmatprep.subr.mxu0 0.0
    %516 = vmatpush1.msra.mxu0 %v318
    %517 = vmatprep.subr.mxu0 0.0
    %518 = vmatpush1.msra.mxu0 %v319
    %519 = vmatprep.subr.mxu0 0.0
    %520 = vmatpush1.msra.mxu0 %v320
    %521 = vmatprep.subr.mxu0 0.0
    %522 = vmatpush1.msra.mxu0 %v321
    %523 = vmatprep.subr.mxu0 0.0
    %524 = vmatpush1.msra.mxu0 %v322
    %525 = vmatprep.subr.mxu0 0.0
    %526 = vmatpush1.msra.mxu0 %v323
    %527 = vmatprep.subr.mxu0 0.0
    %528 = vmatpush1.msra.mxu0 %v324
    %529 = vmatprep.subr.mxu0 0.0
    %530 = vmatpush1.msra.mxu0 %v325
    %531 = vmatprep.subr.mxu0 0.0
    %532 = vmatpush1.msra.mxu0 %v326
    %533 = vmatprep.subr.mxu0 0.0
    %534 = vmatpush1.msra.mxu0 %v327
    %535 = vmatprep.subr.mxu0 0.0
    %536 = vmatpush1.msra.mxu0 %v328
    %537 = vmatprep.subr.mxu0 0.0
    %538 = vmatpush1.msra.mxu0 %v329
    %539 = vmatprep.subr.mxu0 0.0
    %540 = vmatpush1.msra.mxu0 0.0
    %541 = vmatprep.subr.mxu0 0.0
    %542 = vmatpush1.msra.mxu0 0.0
    %543 = vmatprep.subr.mxu0 0.0
    %544 = vmatpush1.msra.mxu0 0.0
    %545 = vmatprep.subr.mxu0 0.0
    %546 = vmatpush1.msra.mxu0 0.0
    %547 = vmatprep.subr.mxu0 0.0
    %548 = vmatpush1.msra.mxu0 0.0
    %549 = vmatprep.subr.mxu0 0.0
    %550 = vmatpush1.msra.mxu0 0.0
    %551 = vmatprep.subr.mxu0 0.0
    %552 = vmatpush1.msra.mxu0 0.0
    %553 = vmatprep.subr.mxu0 0.0
    %554 = vmatpush1.msra.mxu0 0.0
    %555 = vmatprep.subr.mxu0 0.0
    %556 = vmatpush1.msra.mxu0 0.0
    %557 = vmatprep.subr.mxu0 0.0
    %558 = vmatpush1.msra.mxu0 0.0
    %559 = vmatprep.subr.mxu0 0.0
    %560 = vmatpush1.msra.mxu0 0.0
    %561 = vmatprep.subr.mxu0 0.0
    %562 = vmatpush1.msra.mxu0 0.0
    %563 = vmatprep.subr.mxu0 0.0
    %564 = vmatpush1.msra.mxu0 0.0
    %565 = vmatprep.subr.mxu0 0.0
    %566 = vmatpush1.msra.mxu0 0.0
    %567 = vmatprep.subr.mxu0 0.0
    %568 = vmatpush1.msra.mxu0 0.0
    %569 = vmatprep.subr.mxu0 0.0
    %570 = vmatpush1.msra.mxu0 0.0
    %571 = vmatprep.mubr.f32.mxu0 0.0
    %572 = vmatmul.mubr.f32.gmra.mrb[0].mxu0 %v234
    %v573 = vpop.f32.mrb[0].mxu0
    %v574 = vadd.f32 %v489, %v573
    %v575 = vpop.f32.mrb[0].mxu0
    %576 = vmatprep.mubr.f32.mxu0 0.0
    %577 = vmatmul.mubr.f32.gmra.mrb[0].mxu0 %v239
    %v578 = vpop.f32.mrb[0].mxu0
    %v579 = vadd.f32 %v494, %v578
    %v580 = vpop.f32.mrb[0].mxu0
    %581 = vmatprep.mubr.f32.mxu0 0.0
    %582 = vmatmul.mubr.f32.gmra.mrb[0].mxu0 %v244
    %v583 = vpop.f32.mrb[0].mxu0
    %v584 = vadd.f32 %v499, %v583
    %v585 = vpop.f32.mrb[0].mxu0
    %586 = vmatprep.mubr.f32.mxu0 0.0
    %587 = vmatmul.mubr.f32.gmra.mrb[0].mxu0 %v249
    %v588 = vpop.f32.mrb[0].mxu0
    %v589 = vadd.f32 %v504, %v588
    %v590 = vpop.f32.mrb[0].mxu0
    %591 = vdwg.mxu0
    %592 = vst [vmem:[#allocation6] sm:$0xff] %v574
    %593 = vst [vmem:[#allocation6 + $0x8] sm:$0xff] %v579
    %594 = vst [vmem:[#allocation6 + $0x10] sm:$0xff] %v584
    %595 = vst [vmem:[#allocation6 + $0x18] sm:$0xff] %v589
    // Predicated region
    $region22: #{tpu_custom_call.1} parent=1 // pred_check
      _
    $region23: #{tpu_custom_call.1} parent=1 // pred_check_branch
      %597 = sbr.rel (0) target = $region25
    $region24: #{tpu_custom_call.1} parent=1 // pred_region
      %s599 = ssub.s32 512, 512
      %600 = vsyncadd [#allocation5], %s599
      %s601 = sshll.u32 [#allocation6], 4
      %s602 = int_to_ptr.vmem [resolvable:$true] %s601
      %607 = dma.vmem_to_hbm [thread:$0]  %s602, 512, %s4, [#allocation5], 128, 128, 8
    $region25: #{tpu_custom_call.1} parent=1 // pred_fallthru
      _
    // Predicated region
    $region26: #{tpu_custom_call.1} parent=1 // pred_check
      _
    $region27: #{tpu_custom_call.1} parent=1 // pred_check_branch
      %609 = sbr.rel (0) target = $region29
    $region28: #{tpu_custom_call.1} parent=1 // pred_region
      %610 = dma.done [#allocation5], 512
    $region29: #{tpu_custom_call.1} parent=1 // pred_fallthru
      _
    %611 = vsyncpa [#allocation4], 1
    %612 = vsyncpa [#allocation5], 1

</llo_original>
